<compile_context>
chip_gen: v7x
topology: tpu7x:2x2x1
jax: 0.10.0
libtpu: 0.0.40
codegen_flags: <defaults>
</compile_context>

<pallas_src>
import jax
import jax.numpy as jnp
from jax.experimental import pallas as pl
from jax.experimental.pallas import tpu as pltpu


def _conv1x1_mxu_kernel(w_ref, b_ref, x_ref, o_ref):
    """MXU path.
    w_ref: VMEM (C_out, C_in); b_ref: VMEM (C_out, 1) f32
    x_ref: VMEM (Nb, C_in, ts); o_ref: VMEM (Nb, C_out, ts)
    """
    nb = x_ref.shape[0]
    w = w_ref[...]
    b = b_ref[...]
    for i in range(nb):                                   # static unroll over images-per-block
        acc = jnp.dot(w, x_ref[i],
                      preferred_element_type=jnp.float32,
                      precision=jax.lax.Precision.HIGHEST)
        o_ref[i] = (acc + b).astype(o_ref.dtype)


def _conv1x1_vpu_kernel(wt_ref, b_ref, x_ref, o_ref):
    """Tiny-channel path (C_out * C_in <= 32): full-vreg VPU multiplies + XLU sublane reduce.

    wt_ref: VMEM (C_in, C_out) f32  (transposed weight -> a weight column is a cheap lane slice)
    b_ref : SMEM (C_out,) f32
    x_ref : VMEM (Nb, C_in, ts); o_ref: VMEM (Nb, C_out, ts)
    """
    nb, _, _ = x_ref.shape
    c_out = o_ref.shape[1]
    wt = wt_ref[...].astype(jnp.float32)                  # tiny, stays resident
    for i in range(nb):
        x = x_ref[i].astype(jnp.float32)                  # (C_in, ts): full vregs, no row slices
        for co in range(c_out):
            prod = x * wt[:, co:co + 1]                   # lane-broadcast weight column (VPU)
            row = jnp.sum(prod, axis=0) + b_ref[co]       # cross-sublane reduce (XLU) -> (ts,)
            o_ref[i, co, :] = row.astype(o_ref.dtype)     # row written straight to the output


def _round_down_128(v):
    return max(128, (v // 128) * 128)


def _round_up_128(v):
    return ((v + 127) // 128) * 128


def conv1x1_pallas(x_nchw, weight, bias, *,
                   max_tile_lanes=32768,
                   stream_budget_bytes=20 << 20,
                   use_mxu=None):
    """1x1 Conv2d forward (the DownHist pool_conv entry conv).

    x_nchw : (N, C_in, H, W)
    weight : (C_out, C_in, 1, 1)   (PyTorch nn.Conv2d layout)
    bias   : (C_out,)
    returns (N, C_out, H, W)
    """
    N, C_in, H, W = x_nchw.shape
    C_out = weight.shape[0]
    S = H * W
    itemsize = jnp.dtype(x_nchw.dtype).itemsize

    # Free, contiguous reshapes -- no transposes of the activation tensor.
    x_r = x_nchw.reshape(N, C_in, S)                      # (N, C_in, H*W)
    w_mat = weight.reshape(C_out, C_in)                   # (C_out, C_in)

    # ---- tile sizing from a VMEM budget (double-buffered input + output streams) ------------
    bytes_per_lane = 2 * (C_in + C_out) * itemsize
    lanes_budget = max(128, stream_budget_bytes // bytes_per_lane)
    target = _round_down_128(int(min(max_tile_lanes, lanes_budget)))

    s_lanes = max(128, _round_up_128(S))                  # lane footprint of one image's row
    if S >= target:
        ts, Nb = target, 1                                # spatial tiling; ragged tail is masked
    else:
        ts = S                                            # full spatial extent (always legal)
        Nb = int(max(1, min(N, target // s_lanes, 32)))   # batch images up to the target width

    grid = (pl.cdiv(N, Nb), pl.cdiv(S, ts))

    # Keep >= 2 reasonably sized grid steps when there is enough work (both v7x TensorCores busy).
    if grid[0] * grid[1] == 1:
        if N >= 2 and Nb >= 2 and Nb * s_lanes >= 1024:
            Nb = (N + 1) // 2
            grid = (pl.cdiv(N, Nb), 1)
        elif N == 1 and S >= 1024:
            ts = _round_up_128((S + 1) // 2)
            grid = (1, pl.cdiv(S, ts))

    # ---- MXU vs VPU dispatch: only a handful of FMAs go to the VPU, everything else to MXU ---
    if use_mxu is None:
        use_mxu = (C_out * C_in > 32)

    if use_mxu:
        kernel = _conv1x1_mxu_kernel
        w_arg = w_mat.astype(x_nchw.dtype)
        b_arg = bias.astype(jnp.float32).reshape(C_out, 1)
        w_spec = pl.BlockSpec((C_out, C_in), lambda b, s: (0, 0))
        b_spec = pl.BlockSpec((C_out, 1), lambda b, s: (0, 0))
    else:
        kernel = _conv1x1_vpu_kernel
        w_arg = w_mat.T.astype(jnp.float32)               # (C_in, C_out), VMEM-resident
        b_arg = bias.astype(jnp.float32)                  # (C_out,) scalars in SMEM (1D: no pad)
        w_spec = pl.BlockSpec((C_in, C_out), lambda b, s: (0, 0))
        b_spec = pl.BlockSpec(memory_space=pltpu.MemorySpace.SMEM)

    # Scoped-VMEM limit sized to the per-step footprint: raises v5e's 16 MiB scoped default,
    # stays well under v7x's 64 MiB physical VMEM so double-buffering survives.
    data_bytes = 2 * Nb * (C_in + C_out) * max(ts, 128) * itemsize
    w_bytes = 2 * (C_out * C_in + C_out) * 4
    vmem_limit = int(min(60 << 20, max(24 << 20, data_bytes + w_bytes + (4 << 20))))

    cost = pl.CostEstimate(
        flops=2 * N * S * C_in * C_out,
        transcendentals=0,
        bytes_accessed=(N * C_in * S + N * C_out * S) * itemsize
                       + (C_out * C_in + C_out) * 4,
    )

    y_r = pl.pallas_call(
        kernel,
        out_shape=jax.ShapeDtypeStruct((N, C_out, S), x_nchw.dtype),
        grid_spec=pltpu.PrefetchScalarGridSpec(
            num_scalar_prefetch=0,
            grid=grid,
            in_specs=[
                w_spec,
                b_spec,
                pl.BlockSpec((Nb, C_in, ts), lambda b, s: (b, 0, s)),
            ],
            out_specs=pl.BlockSpec((Nb, C_out, ts), lambda b, s: (b, 0, s)),
        ),
        compiler_params=pltpu.CompilerParams(
            dimension_semantics=("parallel", "parallel"),
            vmem_limit_bytes=vmem_limit),
        cost_estimate=cost,
    )(w_arg, b_arg, x_r)

    return y_r.reshape(N, C_out, H, W)                    # free reshape back to NCHW


def conv1x1_reference(x_nchw, weight, bias):
    # Pure-JAX reference: 1x1 conv == contraction over channels + bias (f32-exact on TPU).
    w2d = weight.reshape(weight.shape[0], -1)
    y = jnp.einsum('nchw,oc->nohw', x_nchw, w2d,
                   precision=jax.lax.Precision.HIGHEST)
    return y + bias.reshape(1, -1, 1, 1)


if __name__ == "__main__":
    key = jax.random.PRNGKey(0)
    keys = jax.random.split(key, 12)

    def make_case(kx, kw, kb, N, C_in, C_out, H, W):
        x = jax.random.normal(kx, (N, C_in, H, W), dtype=jnp.float32)
        bound = 1.0 / (C_in ** 0.5)
        weight = jax.random.uniform(kw, (C_out, C_in, 1, 1),
                                    minval=-bound, maxval=bound, dtype=jnp.float32)
        bias = jax.random.uniform(kb, (C_out,), minval=-bound, maxval=bound,
                                  dtype=jnp.float32)
        return x, weight, bias

    # 1) DownHist entry conv, tiny channels (VPU path, images batched into one block):
    #    Conv2d(in_channels=8, in_channels // num_bins = 2, kernel_size=1), num_bins=4.
    x, w, b = make_case(keys[0], keys[1], keys[2], N=2, C_in=8, C_out=2, H=16, W=16)
    y = jax.block_until_ready(conv1x1_pallas(x, w, b))
    assert y.shape == (2, 2, 16, 16)
    assert jnp.allclose(y, conv1x1_reference(x, w, b), atol=1e-5, rtol=1e-5)

    # 2) Larger channel count (MXU path, precision=HIGHEST -> f32-exact).
    x2, w2, b2 = make_case(keys[3], keys[4], keys[5], N=1, C_in=128, C_out=64, H=8, W=8)
    y2 = jax.block_until_ready(conv1x1_pallas(x2, w2, b2))
    assert y2.shape == (1, 64, 8, 8)
    assert jnp.allclose(y2, conv1x1_reference(x2, w2, b2), atol=1e-5, rtol=1e-5)

    # 3) Ragged last spatial tile (S=576, tile=256 -> masked 64-lane tail), MXU path.
    x3, w3, b3 = make_case(keys[6], keys[7], keys[8], N=1, C_in=16, C_out=8, H=24, W=24)
    y3 = jax.block_until_ready(conv1x1_pallas(x3, w3, b3, max_tile_lanes=256))
    assert y3.shape == (1, 8, 24, 24)
    assert jnp.allclose(y3, conv1x1_reference(x3, w3, b3), atol=1e-5, rtol=1e-5)

    # 4) Ragged last batch block (N=3, Nb=2 images per block), VPU path.
    x4, w4, b4 = make_case(keys[9], keys[10], keys[11], N=3, C_in=8, C_out=2, H=16, W=16)
    y4 = jax.block_until_ready(conv1x1_pallas(x4, w4, b4, max_tile_lanes=512))
    assert y4.shape == (3, 2, 16, 16)
    assert jnp.allclose(y4, conv1x1_reference(x4, w4, b4), atol=1e-5, rtol=1e-5)

    print("KERNEL_OK")
</pallas_src>

<mosaic_0001>
module attributes {stable_mosaic.version = 11 : i64} {
  func.func @_conv1x1_vpu_kernel(%arg0: i32, %arg1: i32, %arg2: memref<8x2xf32, #tpu.memory_space<vmem>>, %arg3: memref<2xf32, #tpu.memory_space<smem>>, %arg4: memref<2x8x256xf32, #tpu.memory_space<vmem>>, %arg5: memref<2x2x256xf32, #tpu.memory_space<vmem>>) attributes {dimension_semantics = [#tpu.dimension_semantics<parallel>, #tpu.dimension_semantics<parallel>], iteration_bounds = array<i64: 1, 1>, scalar_prefetch = 0 : i64, scratch_operands = 0 : i64, tpu.core_type = #tpu.core_type<tc>, window_params = [{pipeline_mode = #tpu.pipeline_mode<synchronous>, transform_indices = @transform_0, window_bounds = array<i64: 8, 2>}, {transform_indices = @transform_1, window_bounds = array<i64: 2>}, {transform_indices = @transform_2, window_bounds = array<i64: 2, 8, 256>}, {transform_indices = @transform_3, window_bounds = array<i64: 2, 2, 256>}]} {
    %c0 = arith.constant 0 : index
    %c0_0 = arith.constant 0 : index
    %0 = vector.load %arg2[%c0, %c0_0] : memref<8x2xf32, #tpu.memory_space<vmem>>, vector<8x2xf32>
    %c0_1 = arith.constant 0 : index
    %c0_2 = arith.constant 0 : index
    %c0_3 = arith.constant 0 : index
    %1 = vector.load %arg4[%c0_1, %c0_2, %c0_3] : memref<2x8x256xf32, #tpu.memory_space<vmem>>, vector<1x8x256xf32>
    %2 = vector.shape_cast %1 : vector<1x8x256xf32> to vector<8x256xf32>
    %3 = vector.extract_strided_slice %0 {offsets = [0, 0], sizes = [8, 1], strides = [1, 1]} : vector<8x2xf32> to vector<8x1xf32>
    %4 = vector.broadcast %3 : vector<8x1xf32> to vector<8x256xf32>
    %5 = arith.mulf %2, %4 : vector<8x256xf32>
    %cst = arith.constant dense<0.000000e+00> : vector<256xf32>
    %6 = vector.multi_reduction <add>, %5, %cst [0] : vector<8x256xf32> to vector<256xf32>
    %c0_4 = arith.constant 0 : index
    %7 = memref.load %arg3[%c0_4] : memref<2xf32, #tpu.memory_space<smem>>
    %8 = vector.broadcast %7 : f32 to vector<256xf32>
    %9 = arith.addf %6, %8 : vector<256xf32>
    %c0_5 = arith.constant 0 : index
    %c0_6 = arith.constant 0 : index
    %c0_7 = arith.constant 0 : index
    %10 = vector.load %arg5[%c0_5, %c0_6, %c0_7] : memref<2x2x256xf32, #tpu.memory_space<vmem>>, vector<1x1x256xf32>
    %11 = vector.shape_cast %10 : vector<1x1x256xf32> to vector<256xf32>
    %12 = vector.shape_cast %9 : vector<256xf32> to vector<1x1x256xf32>
    tpu.vector_store %arg5[%c0_5, %c0_6, %c0_7], %12 {strides = array<i32>} : memref<2x2x256xf32, #tpu.memory_space<vmem>>, vector<1x1x256xf32>,
    %13 = vector.extract_strided_slice %0 {offsets = [0, 1], sizes = [8, 1], strides = [1, 1]} : vector<8x2xf32> to vector<8x1xf32>
    %14 = vector.broadcast %13 : vector<8x1xf32> to vector<8x256xf32>
    %15 = arith.mulf %2, %14 : vector<8x256xf32>
    %cst_8 = arith.constant dense<0.000000e+00> : vector<256xf32>
    %16 = vector.multi_reduction <add>, %15, %cst_8 [0] : vector<8x256xf32> to vector<256xf32>
    %c1 = arith.constant 1 : index
    %17 = memref.load %arg3[%c1] : memref<2xf32, #tpu.memory_space<smem>>
    %18 = vector.broadcast %17 : f32 to vector<256xf32>
    %19 = arith.addf %16, %18 : vector<256xf32>
    %c0_9 = arith.constant 0 : index
    %c1_10 = arith.constant 1 : index
    %c0_11 = arith.constant 0 : index
    %20 = vector.load %arg5[%c0_9, %c1_10, %c0_11] : memref<2x2x256xf32, #tpu.memory_space<vmem>>, vector<1x1x256xf32>
    %21 = vector.shape_cast %20 : vector<1x1x256xf32> to vector<256xf32>
    %22 = vector.shape_cast %19 : vector<256xf32> to vector<1x1x256xf32>
    tpu.vector_store %arg5[%c0_9, %c1_10, %c0_11], %22 {strides = array<i32>} : memref<2x2x256xf32, #tpu.memory_space<vmem>>, vector<1x1x256xf32>,
    %c1_12 = arith.constant 1 : index
    %c0_13 = arith.constant 0 : index
    %c0_14 = arith.constant 0 : index
    %23 = vector.load %arg4[%c1_12, %c0_13, %c0_14] : memref<2x8x256xf32, #tpu.memory_space<vmem>>, vector<1x8x256xf32>
    %24 = vector.shape_cast %23 : vector<1x8x256xf32> to vector<8x256xf32>
    %25 = vector.extract_strided_slice %0 {offsets = [0, 0], sizes = [8, 1], strides = [1, 1]} : vector<8x2xf32> to vector<8x1xf32>
    %26 = vector.broadcast %25 : vector<8x1xf32> to vector<8x256xf32>
    %27 = arith.mulf %24, %26 : vector<8x256xf32>
    %cst_15 = arith.constant dense<0.000000e+00> : vector<256xf32>
    %28 = vector.multi_reduction <add>, %27, %cst_15 [0] : vector<8x256xf32> to vector<256xf32>
    %c0_16 = arith.constant 0 : index
    %29 = memref.load %arg3[%c0_16] : memref<2xf32, #tpu.memory_space<smem>>
    %30 = vector.broadcast %29 : f32 to vector<256xf32>
    %31 = arith.addf %28, %30 : vector<256xf32>
    %c1_17 = arith.constant 1 : index
    %c0_18 = arith.constant 0 : index
    %c0_19 = arith.constant 0 : index
    %32 = vector.load %arg5[%c1_17, %c0_18, %c0_19] : memref<2x2x256xf32, #tpu.memory_space<vmem>>, vector<1x1x256xf32>
    %33 = vector.shape_cast %32 : vector<1x1x256xf32> to vector<256xf32>
    %34 = vector.shape_cast %31 : vector<256xf32> to vector<1x1x256xf32>
    tpu.vector_store %arg5[%c1_17, %c0_18, %c0_19], %34 {strides = array<i32>} : memref<2x2x256xf32, #tpu.memory_space<vmem>>, vector<1x1x256xf32>,
    %35 = vector.extract_strided_slice %0 {offsets = [0, 1], sizes = [8, 1], strides = [1, 1]} : vector<8x2xf32> to vector<8x1xf32>
    %36 = vector.broadcast %35 : vector<8x1xf32> to vector<8x256xf32>
    %37 = arith.mulf %24, %36 : vector<8x256xf32>
    %cst_20 = arith.constant dense<0.000000e+00> : vector<256xf32>
    %38 = vector.multi_reduction <add>, %37, %cst_20 [0] : vector<8x256xf32> to vector<256xf32>
    %c1_21 = arith.constant 1 : index
    %39 = memref.load %arg3[%c1_21] : memref<2xf32, #tpu.memory_space<smem>>
    %40 = vector.broadcast %39 : f32 to vector<256xf32>
    %41 = arith.addf %38, %40 : vector<256xf32>
    %c1_22 = arith.constant 1 : index
    %c1_23 = arith.constant 1 : index
    %c0_24 = arith.constant 0 : index
    %42 = vector.load %arg5[%c1_22, %c1_23, %c0_24] : memref<2x2x256xf32, #tpu.memory_space<vmem>>, vector<1x1x256xf32>
    %43 = vector.shape_cast %42 : vector<1x1x256xf32> to vector<256xf32>
    %44 = vector.shape_cast %41 : vector<256xf32> to vector<1x1x256xf32>
    tpu.vector_store %arg5[%c1_22, %c1_23, %c0_24], %44 {strides = array<i32>} : memref<2x2x256xf32, #tpu.memory_space<vmem>>, vector<1x1x256xf32>,
    return
  }
  func.func @transform_0(%arg0: i32, %arg1: i32) -> (i32, i32) {
    %c0_i32 = arith.constant 0 : i32
    %c0_i32_0 = arith.constant 0 : i32
    %c0_i32_1 = arith.constant 0 : i32
    return %c0_i32, %c0_i32_0 : i32, i32
  }
  func.func @transform_1(%arg0: i32, %arg1: i32) -> i32 {
    %c0_i32 = arith.constant 0 : i32
    %c0_i32_0 = arith.constant 0 : i32
    return %c0_i32 : i32
  }
  func.func @transform_2(%arg0: i32, %arg1: i32) -> (i32, i32, i32) {
    %c0_i32 = arith.constant 0 : i32
    %c0_i32_0 = arith.constant 0 : i32
    return %arg0, %c0_i32, %arg1 : i32, i32, i32
  }
  func.func @transform_3(%arg0: i32, %arg1: i32) -> (i32, i32, i32) {
    %c0_i32 = arith.constant 0 : i32
    %c0_i32_0 = arith.constant 0 : i32
    return %arg0, %c0_i32, %arg1 : i32, i32, i32
  }
}

</mosaic_0001>

<llo_original>
// kernel: tpu_custom_call.1
$region0: #{tpu_custom_call.1}
  #allocation0 [shape = 'u32[]', space=smem, size = 0x4, offset = 0x4, fixed_abs, tag = 'smem constant byte address 0x4 - core index']
  #allocation1 [shape = 'u32[144,128]{1,0:T(1,128)}', space=vmem, size = 0x12000, scoped, tag = 'internal scratch']
  %s0 = inlined_call_operand.vmem [shape: f32[8,2], index: 0, kind: input, shape index: {}]
  %s1 = inlined_call_operand.vmem [shape: f32[2], index: 1, kind: input, shape index: {}]
  %s2 = inlined_call_operand.hbm [shape: f32[2,8,256], index: 2, kind: input, shape index: {}]
  %s3 = inlined_call_operand.hbm [shape: f32[2,2,256], index: 3, kind: output, shape index: {}]
  %s4 = sld [smem:[#allocation0]]
  $region30: #{tpu_custom_call.1} parent=0
    _
  %s6 = ssub.s32 1, %s4
  %s7 = scalar_select 0, %s6, %s4
  $region1: #{tpu_custom_call.1} parent=0
    #allocation2 [shape = 'u8[512]{0}', space=smem, size = 0x200, scoped, tag = 'input window, operand 1, single buffered']
    #allocation3 [shape = 's32[1]{0}', space=sflag, size = 0x4, scoped, tag = 'scoped memory for tpu_custom_call.1']
    #allocation4 [shape = 's32[1]{0}', space=sflag, size = 0x4, scoped, tag = 'scoped memory for tpu_custom_call.1']
    #allocation5 [shape = 's32[1]{0}', space=sflag, size = 0x4, scoped, tag = 'scoped memory for tpu_custom_call.1']
    #allocation6 [shape = 'u8[16384]{0}', space=vmem, size = 0x4000, scoped, tag = 'input window, operand 2, single buffered']
    #allocation7 [shape = 'u8[4096]{0}', space=vmem, size = 0x1000, scoped, tag = 'output window, operand 0, single buffered']
    %8 = vsyncpa [#allocation5], 0
    %9 = vsyncpa [#allocation3], 0
    %10 = vsyncpa [#allocation4], 0
    // Predicated region
    $region2: #{tpu_custom_call.1} parent=1 // pred_check
      _
    $region3: #{tpu_custom_call.1} parent=1 // pred_check_branch
      %12 = sbr.rel (0) target = $region5
    $region4: #{tpu_custom_call.1} parent=1 // pred_region
      _
    $region5: #{tpu_custom_call.1} parent=1 // pred_fallthru
      _
    // Predicated region
    $region6: #{tpu_custom_call.1} parent=1 // pred_check
      _
    $region7: #{tpu_custom_call.1} parent=1 // pred_check_branch
      %14 = sbr.rel (0) target = $region9
    $region8: #{tpu_custom_call.1} parent=1 // pred_region
      %s16 = ssub.s32 16, 16
      %17 = vsyncadd [#allocation5], %s16
      %s19 = sshll.u32 %s1, 4
      %s20 = int_to_ptr.vmem [resolvable:$true] %s19
      %22 = dma.vmem_to_smem %s20, 16, [#allocation2], [#allocation5]
    $region9: #{tpu_custom_call.1} parent=1 // pred_fallthru
      _
    // Predicated region
    $region10: #{tpu_custom_call.1} parent=1 // pred_check
      _
    $region11: #{tpu_custom_call.1} parent=1 // pred_check_branch
      %24 = sbr.rel (0) target = $region13
    $region12: #{tpu_custom_call.1} parent=1 // pred_region
      %s26 = ssub.s32 512, 512
      %27 = vsyncadd [#allocation3], %s26
      %s28 = sshll.u32 [#allocation6], 4
      %s29 = int_to_ptr.vmem [resolvable:$true] %s28
      %34 = dma.hbm_to_vmem [thread:$0]  %s2, 512, %s29, [#allocation3], 256, 256, 16
    $region13: #{tpu_custom_call.1} parent=1 // pred_fallthru
      _
    // Predicated region
    $region14: #{tpu_custom_call.1} parent=1 // pred_check
      _
    $region15: #{tpu_custom_call.1} parent=1 // pred_check_branch
      %36 = sbr.rel (0) target = $region17
    $region16: #{tpu_custom_call.1} parent=1 // pred_region
      %37 = dma.done [#allocation5], 16
    $region17: #{tpu_custom_call.1} parent=1 // pred_fallthru
      _
    // Predicated region
    $region18: #{tpu_custom_call.1} parent=1 // pred_check
      _
    $region19: #{tpu_custom_call.1} parent=1 // pred_check_branch
      %39 = sbr.rel (0) target = $region21
    $region20: #{tpu_custom_call.1} parent=1 // pred_region
      %40 = dma.done [#allocation3], 512
    $region21: #{tpu_custom_call.1} parent=1 // pred_fallthru
      _
    %41 = sfence
    %v42 = vld [vmem:[%s0] sm:$0xff]
    %v43 = vld [vmem:[#allocation6] sm:$0xff]
    %v44 = vld [vmem:[#allocation6 + $0x8] sm:$0xff]
    %46 = vset.pattern.permute.xlu0 0
    %47 = vperm.xlu0 %46, %v42
    %v48 = vpop.permute.xlu0 %47
    %v50 = vmul.f32 %v43, %v48
    %v51 = vmul.f32 %v44, %v48
    %v52 = vrot.slane %v50, 4
    %v53 = vadd.f32 %v50, %v52
    %v54 = vrot.slane %v53, 2
    %v55 = vadd.f32 %v53, %v54
    %v56 = vrot.slane %v55, 1
    %v57 = vadd.f32 %v55, %v56
    %v58 = vrot.slane %v51, 4
    %v59 = vadd.f32 %v51, %v58
    %v60 = vrot.slane %v59, 2
    %v61 = vadd.f32 %v59, %v60
    %v62 = vrot.slane %v61, 1
    %v63 = vadd.f32 %v61, %v62
    %s64 = sld [smem:[#allocation2]]
    %v65 = vstv %s64
    %v66 = vadd.f32 %v57, %v65
    %v67 = vadd.f32 %v63, %v65
    %v70 = vcombine.low %v66, %v67
    %v72 = vunpack.c.l.s4 1966171168
    %v73 = vunpack.c.0.s8 %v72
    %v74 = vlaneseq
    %v75 = vshrl.u32 %v74, 7
    %v76 = vsub.s32 %v73, %v75
    %v77 = vrot.slane %v70, %v76
    %v79 = vunpack.c.l.s4 1966171168
    %v80 = vunpack.c.0.s8 %v79
    %v81 = vlaneseq
    %v82 = vshrl.u32 %v81, 7
    %v83 = vsub.s32 %v80, %v82
    %v84 = vrot.slane %v77, %v83
    %v86 = vlaneseq
    %vm87 = vcmp.ge.s32.totalorder %v86, 0
    %vm88 = vcmp.lt.s32.totalorder %v86, 256
    %vm89 = vmand %vm87, %vm88
    %90 = vst.msk [vmem:[#allocation7] ss:$2 sm:$0x3] %vm89, %v84
    %91 = vset.pattern.permute.xlu0 1
    %92 = vperm.xlu0 %91, %v42
    %v93 = vpop.permute.xlu0 %92
    %v95 = vmul.f32 %v43, %v93
    %v96 = vmul.f32 %v44, %v93
    %v97 = vrot.slane %v95, 4
    %v98 = vadd.f32 %v95, %v97
    %v99 = vrot.slane %v98, 2
    %v100 = vadd.f32 %v98, %v99
    %v101 = vrot.slane %v100, 1
    %v102 = vadd.f32 %v100, %v101
    %v103 = vrot.slane %v96, 4
    %v104 = vadd.f32 %v96, %v103
    %v105 = vrot.slane %v104, 2
    %v106 = vadd.f32 %v104, %v105
    %v107 = vrot.slane %v106, 1
    %v108 = vadd.f32 %v106, %v107
    %s109 = sld [smem:[#allocation2 + $0x1]]
    %v110 = vstv %s109
    %v111 = vadd.f32 %v102, %v110
    %v112 = vadd.f32 %v108, %v110
    %v115 = vcombine.low %v111, %v112
    %v117 = vunpack.c.l.s4 1966171168
    %v118 = vunpack.c.0.s8 %v117
    %v119 = vlaneseq
    %v120 = vshrl.u32 %v119, 7
    %v121 = vsub.s32 %v118, %v120
    %v122 = vrot.slane %v115, %v121
    %v124 = vunpack.c.l.s4 1966171168
    %v125 = vunpack.c.0.s8 %v124
    %v126 = vlaneseq
    %v127 = vshrl.u32 %v126, 7
    %v128 = vsub.s32 %v125, %v127
    %v129 = vrot.slane %v122, %v128
    %s131 = scalar_lea.vmem [#allocation7], 1
    %132 = vst.msk [vmem:[%s131] ss:$2 sm:$0x3] %vm89, %v129
    %s133 = scalar_lea.vmem [#allocation6], 16
    %v134 = vld [vmem:[%s133] sm:$0xff]
    %v135 = vld [vmem:[%s133 + $0x8] sm:$0xff]
    %v136 = vmul.f32 %v134, %v48
    %v137 = vmul.f32 %v135, %v48
    %v138 = vrot.slane %v136, 4
    %v139 = vadd.f32 %v136, %v138
    %v140 = vrot.slane %v139, 2
    %v141 = vadd.f32 %v139, %v140
    %v142 = vrot.slane %v141, 1
    %v143 = vadd.f32 %v141, %v142
    %v144 = vrot.slane %v137, 4
    %v145 = vadd.f32 %v137, %v144
    %v146 = vrot.slane %v145, 2
    %v147 = vadd.f32 %v145, %v146
    %v148 = vrot.slane %v147, 1
    %v149 = vadd.f32 %v147, %v148
    %s150 = sld [smem:[#allocation2]]
    %v151 = vstv %s150
    %v152 = vadd.f32 %v143, %v151
    %v153 = vadd.f32 %v149, %v151
    %v156 = vcombine.low %v152, %v153
    %v158 = vunpack.c.l.s4 1966171168
    %v159 = vunpack.c.0.s8 %v158
    %v160 = vlaneseq
    %v161 = vshrl.u32 %v160, 7
    %v162 = vsub.s32 %v159, %v161
    %v163 = vrot.slane %v156, %v162
    %v165 = vunpack.c.l.s4 1966171168
    %v166 = vunpack.c.0.s8 %v165
    %v167 = vlaneseq
    %v168 = vshrl.u32 %v167, 7
    %v169 = vsub.s32 %v166, %v168
    %v170 = vrot.slane %v163, %v169
    %s172 = scalar_lea.vmem [#allocation7], 4
    %173 = vst.msk [vmem:[%s172] ss:$2 sm:$0x3] %vm89, %v170
    %v174 = vmul.f32 %v134, %v93
    %v175 = vmul.f32 %v135, %v93
    %v176 = vrot.slane %v174, 4
    %v177 = vadd.f32 %v174, %v176
    %v178 = vrot.slane %v177, 2
    %v179 = vadd.f32 %v177, %v178
    %v180 = vrot.slane %v179, 1
    %v181 = vadd.f32 %v179, %v180
    %v182 = vrot.slane %v175, 4
    %v183 = vadd.f32 %v175, %v182
    %v184 = vrot.slane %v183, 2
    %v185 = vadd.f32 %v183, %v184
    %v186 = vrot.slane %v185, 1
    %v187 = vadd.f32 %v185, %v186
    %s188 = sld [smem:[#allocation2 + $0x1]]
    %v189 = vstv %s188
    %v190 = vadd.f32 %v181, %v189
    %v191 = vadd.f32 %v187, %v189
    %v194 = vcombine.low %v190, %v191
    %v196 = vunpack.c.l.s4 1966171168
    %v197 = vunpack.c.0.s8 %v196
    %v198 = vlaneseq
    %v199 = vshrl.u32 %v198, 7
    %v200 = vsub.s32 %v197, %v199
    %v201 = vrot.slane %v194, %v200
    %v203 = vunpack.c.l.s4 1966171168
    %v204 = vunpack.c.0.s8 %v203
    %v205 = vlaneseq
    %v206 = vshrl.u32 %v205, 7
    %v207 = vsub.s32 %v204, %v206
    %v208 = vrot.slane %v201, %v207
    %s210 = scalar_lea.vmem %s172, 1 [#allocation7]
    %211 = vst.msk [vmem:[%s210] ss:$2 sm:$0x3] %vm89, %v208
    // Predicated region
    $region22: #{tpu_custom_call.1} parent=1 // pred_check
      _
    $region23: #{tpu_custom_call.1} parent=1 // pred_check_branch
      %213 = sbr.rel (0) target = $region25
    $region24: #{tpu_custom_call.1} parent=1 // pred_region
      %s215 = ssub.s32 128, 128
      %216 = vsyncadd [#allocation4], %s215
      %s217 = sshll.u32 [#allocation7], 4
      %s218 = int_to_ptr.vmem [resolvable:$true] %s217
      %223 = dma.vmem_to_hbm [thread:$0]  %s218, 128, %s3, [#allocation4], 64, 64, 4
    $region25: #{tpu_custom_call.1} parent=1 // pred_fallthru
      _
    // Predicated region
    $region26: #{tpu_custom_call.1} parent=1 // pred_check
      _
    $region27: #{tpu_custom_call.1} parent=1 // pred_check_branch
      %225 = sbr.rel (0) target = $region29
    $region28: #{tpu_custom_call.1} parent=1 // pred_region
      %226 = dma.done [#allocation4], 128
    $region29: #{tpu_custom_call.1} parent=1 // pred_fallthru
      _
    %227 = vsyncpa [#allocation3], 1
    %228 = vsyncpa [#allocation4], 1
    %229 = vsyncpa [#allocation5], 1

</llo_original>
